<compile_context>
chip_gen: v5e
topology: v5e:2x2
jax: 0.10.0
libtpu: 0.0.40
codegen_flags: <defaults>
</compile_context>

<pallas_src>
import functools

import jax
import jax.numpy as jnp
from jax import lax
from jax.experimental import pallas as pl
from jax.experimental.pallas import tpu as pltpu


def _round_up(x, m):
    return (x + m - 1) // m * m


def _vmem_budget_bytes():
    """Generation-aware VMEM budget: half of physical VMEM, capped at 64 MiB.
    -> ~64 MiB on v5e/v6e (128 MiB VMEM), ~32 MiB per TensorCore on v7x."""
    cap = 64 * 1024 * 1024  # conservative default (v7x per-TC VMEM)
    try:
        info = pltpu.get_tpu_info()
        cap = int(getattr(info, "vmem_capacity_bytes", cap)) or cap
    except Exception:
        pass
    return min(cap // 2, 64 * 1024 * 1024)


def _plan_tiles(batch, dim, num_classes, itemsize, budget, tile_b=None, tile_c=None):
    pack = max(8, 32 // itemsize)                 # sublane pack: 8 f32, 16 bf16

    def centers_bytes(tc):                        # 2x: pipeline double-buffers inputs
        return 2 * tc * (dim * itemsize + 4)

    cp_full = _round_up(num_classes, 128)
    if tile_c is None:
        if centers_bytes(cp_full) <= budget // 3:
            tile_c = cp_full                      # all classes resident
        else:
            tile_c = (budget // 3) // (2 * (dim * itemsize + 4)) // 128 * 128
            tile_c = max(128, min(tile_c, cp_full))
    if centers_bytes(tile_c) > budget - (2 << 20):
        # TODO(synk): also tile the feature dim D for extreme D sizes.
        raise ValueError("center tile does not fit the VMEM budget; "
                         "reduce dim_hidden or raise the budget")
    cp = _round_up(num_classes, tile_c)
    num_c = cp // tile_c

    if tile_b is None:
        remaining = budget - centers_bytes(tile_c) - (1 << 20)
        # per-row: 2x hidden buffers + 2x label buffers + ~4 f32 temporaries.
        per_row = 2 * dim * itemsize + 2 * 4 + 4 * tile_c * 4
        tb = max(pack, remaining // per_row)
        tb = min(tb, 2048)
        if batch <= pack:
            tb = batch                            # block dim == full dim is legal
        else:
            tb = min(tb, batch // pack * pack)    # keep blocks inside the array
            if tb >= 256:
                tb = tb // 256 * 256              # full MXU M-tiles
            else:
                tb = max(pack, tb // pack * pack)
        tile_b = tb
    num_b = (batch + tile_b - 1) // tile_b
    return tile_b, tile_c, num_b, num_c, cp


def _ccl_tile_kernel(y_ref, h_ref, ct_ref, csq_ref, out_ref, *,
                     batch, need_row_mask):
    # y_ref:   [TB, 1]     int32 labels for this batch tile
    # h_ref:   [TB, D]     features (input dtype, unpadded D)
    # ct_ref:  [D,  TC]    class-tile of transposed centers (matmul dtype)
    # csq_ref: [1,  TC]    f32 squared center norms; padded cols = -f32max
    # out_ref: [1,1,1,128] f32 partials: lane0 = intra, lane1 = total
    j = pl.program_id(1)                       # class-tile index
    tb = h_ref.shape[0]
    tc = ct_ref.shape[1]

    h = h_ref[...]
    hf = h.astype(jnp.float32)
    h_sq = jnp.sum(hf * hf, axis=1, keepdims=True)                       # [TB,1]

    # MXU cross term with f32 accumulation.
    hm = h if h.dtype == ct_ref.dtype else h.astype(ct_ref.dtype)
    cross = jnp.dot(hm, ct_ref[...], preferred_element_type=jnp.float32)  # [TB,TC]

    dist = h_sq + csq_ref[...] - 2.0 * cross                              # [TB,TC]
    # Guards cancellation AND zeroes padded class columns (csq = -f32max there).
    dist = jnp.maximum(dist, 0.0)

    if need_row_mask:                            # only emitted for ragged B
        i = pl.program_id(0)
        row = lax.broadcasted_iota(jnp.int32, (tb, 1), 0)
        dist = jnp.where(i * tb + row < batch, dist, 0.0)

    # One-hot gather of each row's own class column within this class tile.
    col = lax.broadcasted_iota(jnp.int32, (tb, tc), 1)
    onehot = col == (y_ref[...] - j * tc)                                  # [TB,TC]

    total_p = jnp.sum(dist, axis=1, keepdims=True).sum(axis=0, keepdims=True)
    intra_p = jnp.sum(jnp.where(onehot, dist, 0.0),
                      axis=1, keepdims=True).sum(axis=0, keepdims=True)

    lane = lax.broadcasted_iota(jnp.int32, (1, 1, 1, 128), 3)
    out_ref[...] = (jnp.where(lane == 0, intra_p.reshape(1, 1, 1, 1), 0.0)
                    + jnp.where(lane == 1, total_p.reshape(1, 1, 1, 1), 0.0))


def contrastive_center_loss(y, hidden, centers, lambda_c=1.0,
                            tile_b=None, tile_c=None, matmul_dtype=None):
    """Pallas implementation of ContrastiveCenterLoss.forward.

    y:       [B] integer class labels
    hidden:  [B, D] float features (f32 or bf16) -- streamed directly, no copy
    centers: [C, D] float class centers
    matmul_dtype: optional lower-precision dtype (e.g. jnp.bfloat16) for the
                  MXU cross term on f32 inputs.
    returns: scalar float32 loss
    """
    B, D = hidden.shape
    C, Dc = centers.shape
    assert D == Dc, "hidden dim mismatch"

    in_dtype = jnp.dtype(hidden.dtype)
    itemsize = in_dtype.itemsize
    store_dtype = jnp.dtype(matmul_dtype) if matmul_dtype is not None else in_dtype

    budget = _vmem_budget_bytes()
    tile_b, tile_c, num_b, num_c, Cp = _plan_tiles(
        B, D, C, itemsize, budget, tile_b=tile_b, tile_c=tile_c)

    # Centers: pad the class dim (parameter-sized, one small copy), quantize
    # once to the matmul storage dtype, and derive the squared norms from the
    # *same* quantized values so cross and csq are consistent.  Padded columns
    # get a large-negative csq so max(dist, 0) kills them inside the kernel.
    centers_s = jnp.zeros((Cp, D), store_dtype).at[:C, :].set(
        centers.astype(store_dtype))
    centers_t = centers_s.T                                                # [D, Cp]
    csq_valid = jnp.sum(centers_s.astype(jnp.float32) ** 2, axis=1)        # [Cp]
    csq = jnp.where(jnp.arange(Cp) < C, csq_valid,
                    jnp.finfo(jnp.float32).min)[None, :]                   # [1, Cp]

    # Labels as a tiny [B,1] i32 column; `hidden` is passed straight through.
    y2d = y.astype(jnp.int32).reshape(B, 1)

    need_row_mask = (B % tile_b) != 0
    kernel = functools.partial(_ccl_tile_kernel, batch=B,
                               need_row_mask=need_row_mask)

    cost = pl.CostEstimate(
        flops=2 * num_b * tile_b * Cp * D + 8 * num_b * tile_b * Cp,
        transcendentals=0,
        bytes_accessed=(B * D * itemsize + B * 4
                        + (num_b if num_c > 1 else 1)
                        * Cp * (D * store_dtype.itemsize + 4)
                        + num_b * num_c * 128 * 4),
    )

    partials = pl.pallas_call(
        kernel,
        out_shape=jax.ShapeDtypeStruct((num_b, num_c, 1, 128), jnp.float32),
        grid=(num_b, num_c),
        in_specs=[
            pl.BlockSpec((tile_b, 1), lambda i, j: (i, 0)),    # labels tile
            pl.BlockSpec((tile_b, D), lambda i, j: (i, 0)),    # hidden tile (streamed)
            pl.BlockSpec((D, tile_c), lambda i, j: (0, j)),    # centers tile
            pl.BlockSpec((1, tile_c), lambda i, j: (0, j)),    # center norms tile
        ],
        out_specs=pl.BlockSpec((1, 1, 1, 128), lambda i, j: (i, j, 0, 0)),
        compiler_params=pltpu.CompilerParams(
            dimension_semantics=("parallel", "arbitrary"),
            vmem_limit_bytes=budget),
        cost_estimate=cost,
    )(y2d, hidden, centers_t, csq)

    intra = jnp.sum(partials[..., 0])
    total = jnp.sum(partials[..., 1])
    inter = total - intra
    epsilon = jnp.float32(1e-6)
    loss = jnp.float32(lambda_c) / 2.0 / B * intra / (inter + epsilon) / jnp.float32(0.1)
    return loss


def _reference_loss(y, hidden, centers, lambda_c=1.0):
    # Pure-JAX reference mirroring the PyTorch forward exactly.
    B = hidden.shape[0]
    diff = hidden[:, None, :] - centers[None, :, :]          # [B, C, D]
    dist = jnp.sum(diff * diff, axis=-1)                     # [B, C]
    intra = jnp.sum(jnp.take_along_axis(dist, y[:, None], axis=1))
    inter = jnp.sum(dist) - intra
    return lambda_c / 2.0 / B * intra / (inter + 1e-6) / 0.1


if __name__ == "__main__":
    key = jax.random.PRNGKey(0)

    # Test 1: module-sized shapes; forced tile_b=8 exercises multi-tile
    # streaming plus the ragged-row mask (13 % 8 != 0).
    dim_hidden, num_classes, batch = 32, 4, 13
    k1, k2, k3, key = jax.random.split(key, 4)
    centers = jax.random.normal(k1, (num_classes, dim_hidden), jnp.float32)
    hidden = jax.random.normal(k2, (batch, dim_hidden), jnp.float32)
    y = jax.random.randint(k3, (batch,), 0, num_classes, jnp.int32)

    loss = jax.block_until_ready(
        contrastive_center_loss(y, hidden, centers, lambda_c=1.0, tile_b=8))
    ref = _reference_loss(y, hidden, centers, lambda_c=1.0)
    assert jnp.allclose(loss, ref, rtol=1e-3, atol=1e-6), (loss, ref)

    # Test 2: class-tiled path (C > 128 -> two class tiles), auto-planned
    # batch tile, and another ragged last batch tile.
    dim_hidden, num_classes, batch = 64, 200, 21
    k1, k2, k3, key = jax.random.split(key, 4)
    centers = jax.random.normal(k1, (num_classes, dim_hidden), jnp.float32)
    hidden = jax.random.normal(k2, (batch, dim_hidden), jnp.float32)
    y = jax.random.randint(k3, (batch,), 0, num_classes, jnp.int32)

    loss = jax.block_until_ready(
        contrastive_center_loss(y, hidden, centers, lambda_c=1.0, tile_c=128))
    ref = _reference_loss(y, hidden, centers, lambda_c=1.0)
    assert jnp.allclose(loss, ref, rtol=1e-3, atol=1e-6), (loss, ref)

    print("KERNEL_OK")
</pallas_src>

<mosaic_0001>
module attributes {stable_mosaic.version = 11 : i64} {
  func.func @_ccl_tile_kernel(%arg0: i32, %arg1: i32, %arg2: memref<8x1xi32, #tpu.memory_space<vmem>>, %arg3: memref<8x32xf32, #tpu.memory_space<vmem>>, %arg4: memref<32x128xf32, #tpu.memory_space<vmem>>, %arg5: memref<1x128xf32, #tpu.memory_space<vmem>>, %arg6: memref<1x1x1x128xf32, #tpu.memory_space<vmem>>) attributes {dimension_semantics = [#tpu.dimension_semantics<parallel>, #tpu.dimension_semantics<arbitrary>], iteration_bounds = array<i64: 2, 1>, scalar_prefetch = 0 : i64, scratch_operands = 0 : i64, tpu.core_type = #tpu.core_type<tc>, window_params = [{transform_indices = @transform_0, window_bounds = array<i64: 8, 1>}, {transform_indices = @transform_1, window_bounds = array<i64: 8, 32>}, {transform_indices = @transform_2, window_bounds = array<i64: 32, 128>}, {transform_indices = @transform_3, window_bounds = array<i64: 1, 128>}, {transform_indices = @transform_4, window_bounds = array<i64: 1, 1, 1, 128>}]} {
    %c0 = arith.constant 0 : index
    %c0_0 = arith.constant 0 : index
    %0 = vector.load %arg3[%c0, %c0_0] : memref<8x32xf32, #tpu.memory_space<vmem>>, vector<8x32xf32>
    %1 = arith.mulf %0, %0 : vector<8x32xf32>
    %cst = arith.constant dense<0.000000e+00> : vector<8xf32>
    %2 = vector.multi_reduction <add>, %1, %cst [1] : vector<8x32xf32> to vector<8xf32>
    %3 = vector.shape_cast %2 : vector<8xf32> to vector<8x1xf32>
    %c0_1 = arith.constant 0 : index
    %c0_2 = arith.constant 0 : index
    %4 = vector.load %arg4[%c0_1, %c0_2] : memref<32x128xf32, #tpu.memory_space<vmem>>, vector<32x128xf32>
    %cst_3 = arith.constant dense<0.000000e+00> : vector<8x128xf32>
    %5 = tpu.matmul %0, %4, %cst_3 {dimension_numbers = #tpu.dot_dimension_numbers<[1], [0], [0], [1], [0, 0, 1, 1], [], []>} : vector<8x32xf32>, vector<32x128xf32>, vector<8x128xf32> -> vector<8x128xf32>
    %c0_4 = arith.constant 0 : index
    %c0_5 = arith.constant 0 : index
    %6 = vector.load %arg5[%c0_4, %c0_5] : memref<1x128xf32, #tpu.memory_space<vmem>>, vector<1x128xf32>
    %7 = vector.broadcast %3 : vector<8x1xf32> to vector<8x128xf32>
    %8 = vector.broadcast %6 : vector<1x128xf32> to vector<8x128xf32>
    %9 = arith.addf %7, %8 : vector<8x128xf32>
    %cst_6 = arith.constant 2.000000e+00 : f32
    %10 = vector.broadcast %cst_6 : f32 to vector<8x128xf32>
    %11 = arith.mulf %10, %5 : vector<8x128xf32>
    %12 = arith.subf %9, %11 : vector<8x128xf32>
    %cst_7 = arith.constant 0.000000e+00 : f32
    %13 = vector.broadcast %cst_7 : f32 to vector<8x128xf32>
    %14 = arith.maximumf %12, %13 : vector<8x128xf32>
    %15 = tpu.iota {dimensions = array<i32: 0>} : vector<8x1xi32>
    %c8_i32 = arith.constant 8 : i32
    %16 = arith.muli %arg0, %c8_i32 : i32
    %17 = vector.broadcast %16 : i32 to vector<8x1xi32>
    %18 = arith.addi %17, %15 : vector<8x1xi32>
    %c13_i32 = arith.constant 13 : i32
    %19 = vector.broadcast %c13_i32 : i32 to vector<8x1xi32>
    %20 = arith.cmpi slt, %18, %19 : vector<8x1xi32>
    %cst_8 = arith.constant 0.000000e+00 : f32
    %21 = vector.shape_cast %20 : vector<8x1xi1> to vector<8x1xi1>
    %22 = vector.broadcast %21 : vector<8x1xi1> to vector<8x128xi1>
    %23 = vector.broadcast %cst_8 : f32 to vector<8x128xf32>
    %24 = arith.select %22, %14, %23 : vector<8x128xi1>, vector<8x128xf32>
    %25 = tpu.iota {dimensions = array<i32: 1>} : vector<8x128xi32>
    %c0_9 = arith.constant 0 : index
    %c0_10 = arith.constant 0 : index
    %26 = vector.load %arg2[%c0_9, %c0_10] : memref<8x1xi32, #tpu.memory_space<vmem>>, vector<8x1xi32>
    %c128_i32 = arith.constant 128 : i32
    %27 = arith.muli %arg1, %c128_i32 : i32
    %28 = vector.broadcast %27 : i32 to vector<8x1xi32>
    %29 = arith.subi %26, %28 : vector<8x1xi32>
    %30 = vector.broadcast %29 : vector<8x1xi32> to vector<8x128xi32>
    %31 = arith.cmpi eq, %25, %30 : vector<8x128xi32>
    %cst_11 = arith.constant dense<0.000000e+00> : vector<8xf32>
    %32 = vector.multi_reduction <add>, %24, %cst_11 [1] : vector<8x128xf32> to vector<8xf32>
    %33 = vector.shape_cast %32 : vector<8xf32> to vector<8x1xf32>
    %cst_12 = arith.constant dense<0.000000e+00> : vector<1xf32>
    %34 = vector.multi_reduction <add>, %33, %cst_12 [0] : vector<8x1xf32> to vector<1xf32>
    %35 = vector.shape_cast %34 : vector<1xf32> to vector<1x1xf32>
    %cst_13 = arith.constant 0.000000e+00 : f32
    %36 = vector.broadcast %cst_13 : f32 to vector<8x128xf32>
    %37 = arith.select %31, %24, %36 : vector<8x128xi1>, vector<8x128xf32>
    %cst_14 = arith.constant dense<0.000000e+00> : vector<8xf32>
    %38 = vector.multi_reduction <add>, %37, %cst_14 [1] : vector<8x128xf32> to vector<8xf32>
    %39 = vector.shape_cast %38 : vector<8xf32> to vector<8x1xf32>
    %cst_15 = arith.constant dense<0.000000e+00> : vector<1xf32>
    %40 = vector.multi_reduction <add>, %39, %cst_15 [0] : vector<8x1xf32> to vector<1xf32>
    %41 = vector.shape_cast %40 : vector<1xf32> to vector<1x1xf32>
    %42 = tpu.iota {dimensions = array<i32: 3>} : vector<1x1x1x128xi32>
    %c0_i32 = arith.constant 0 : i32
    %43 = vector.broadcast %c0_i32 : i32 to vector<1x1x1x128xi32>
    %44 = arith.cmpi eq, %42, %43 : vector<1x1x1x128xi32>
    %45 = vector.shape_cast %41 : vector<1x1xf32> to vector<1x1x1x1xf32>
    %cst_16 = arith.constant 0.000000e+00 : f32
    %46 = vector.shape_cast %45 : vector<1x1x1x1xf32> to vector<1x1x1x1xf32>
    %47 = vector.broadcast %46 : vector<1x1x1x1xf32> to vector<1x1x1x128xf32>
    %48 = vector.broadcast %cst_16 : f32 to vector<1x1x1x128xf32>
    %49 = arith.select %44, %47, %48 : vector<1x1x1x128xi1>, vector<1x1x1x128xf32>
    %c1_i32 = arith.constant 1 : i32
    %50 = vector.broadcast %c1_i32 : i32 to vector<1x1x1x128xi32>
    %51 = arith.cmpi eq, %42, %50 : vector<1x1x1x128xi32>
    %52 = vector.shape_cast %35 : vector<1x1xf32> to vector<1x1x1x1xf32>
    %cst_17 = arith.constant 0.000000e+00 : f32
    %53 = vector.shape_cast %52 : vector<1x1x1x1xf32> to vector<1x1x1x1xf32>
    %54 = vector.broadcast %53 : vector<1x1x1x1xf32> to vector<1x1x1x128xf32>
    %55 = vector.broadcast %cst_17 : f32 to vector<1x1x1x128xf32>
    %56 = arith.select %51, %54, %55 : vector<1x1x1x128xi1>, vector<1x1x1x128xf32>
    %57 = arith.addf %49, %56 : vector<1x1x1x128xf32>
    %c0_18 = arith.constant 0 : index
    %c0_19 = arith.constant 0 : index
    %c0_20 = arith.constant 0 : index
    %c0_21 = arith.constant 0 : index
    %58 = vector.load %arg6[%c0_18, %c0_19, %c0_20, %c0_21] : memref<1x1x1x128xf32, #tpu.memory_space<vmem>>, vector<1x1x1x128xf32>
    tpu.vector_store %arg6[%c0_18, %c0_19, %c0_20, %c0_21], %57 {strides = array<i32>} : memref<1x1x1x128xf32, #tpu.memory_space<vmem>>, vector<1x1x1x128xf32>,
    return
  }
  func.func @transform_0(%arg0: i32, %arg1: i32) -> (i32, i32) {
    %c0_i32 = arith.constant 0 : i32
    %c0_i32_0 = arith.constant 0 : i32
    return %arg0, %c0_i32 : i32, i32
  }
  func.func @transform_1(%arg0: i32, %arg1: i32) -> (i32, i32) {
    %c0_i32 = arith.constant 0 : i32
    %c0_i32_0 = arith.constant 0 : i32
    return %arg0, %c0_i32 : i32, i32
  }
  func.func @transform_2(%arg0: i32, %arg1: i32) -> (i32, i32) {
    %c0_i32 = arith.constant 0 : i32
    %c0_i32_0 = arith.constant 0 : i32
    return %c0_i32, %arg1 : i32, i32
  }
  func.func @transform_3(%arg0: i32, %arg1: i32) -> (i32, i32) {
    %c0_i32 = arith.constant 0 : i32
    %c0_i32_0 = arith.constant 0 : i32
    return %c0_i32, %arg1 : i32, i32
  }
  func.func @transform_4(%arg0: i32, %arg1: i32) -> (i32, i32, i32, i32) {
    %c0_i32 = arith.constant 0 : i32
    %c0_i32_0 = arith.constant 0 : i32
    %c0_i32_1 = arith.constant 0 : i32
    return %arg0, %arg1, %c0_i32, %c0_i32_0 : i32, i32, i32, i32
  }
}

</mosaic_0001>

<llo_original>
// kernel: tpu_custom_call.1
$region0: #{tpu_custom_call.1}
  #allocation0 [shape = 'u32[]', space=smem, size = 0x4, offset = 0x4, fixed_abs, tag = 'smem constant byte address 0x4 - core index']
  #allocation1 [shape = 'u32[72,128]{1,0:T(1,128)}', space=vmem, size = 0x9000, scoped, tag = 'internal scratch']
  %s0 = inlined_call_operand.vmem [shape: s32[13,1], index: 0, kind: input, shape index: {}]
  %s1 = inlined_call_operand.vmem [shape: f32[13,32], index: 1, kind: input, shape index: {}]
  %s2 = inlined_call_operand.hbm [shape: f32[32,128], index: 2, kind: input, shape index: {}]
  %s3 = inlined_call_operand.vmem [shape: f32[1,128], index: 3, kind: input, shape index: {}]
  %s4 = inlined_call_operand.hbm [shape: f32[2,1,1,128], index: 4, kind: output, shape index: {}]
  %s5 = sld [smem:[#allocation0]]
  $region53: #{tpu_custom_call.1} parent=0
    _
  %s7 = ssub.s32 1, %s5
  %s8 = scalar_select 0, %s7, %s5
  $region1: #{tpu_custom_call.1} parent=0
    #allocation2 [shape = 'u8[16384]{0}', space=vmem, size = 0x4000, scoped, tag = 'input window, operand 2, single buffered']
    #allocation3 [shape = 's32[2]{0}', space=sflag, size = 0x8, scoped, tag = 'scoped memory for tpu_custom_call.1']
    #allocation4 [shape = 's32[2]{0}', space=sflag, size = 0x8, scoped, tag = 'scoped memory for tpu_custom_call.1']
    #allocation5 [shape = 'u8[1024]{0}', space=vmem, size = 0x400, scoped, tag = 'output window, operand 0']
    %9 = vsyncpa [#allocation3], 0
    %10 = vsyncpa [#allocation4], 0
    %s11 = scalar_lea.sflag [#allocation4], 1
    %12 = vsyncpa %s11, 0
    loop: start=0, step=1, limit=4
    $region2: #{tpu_custom_call.1} parent=1 // loop_pre_header
      _
    $region3: #{tpu_custom_call.1} parent=1 // loop_header
      %s14 = sphi 0, %s18
      %p15 = scmp.ge.s32.totalorder %s14, 4
      %s21 = sphi 0, %s33
      %s22 = sphi 0, %s29
      %s23 = sphi 0, %s21
      %s24 = sphi 0, %s22
      %s25 = sphi 0, %s23
      %s26 = sphi 0, %s24
      %s36 = sphi 0, %s38
      %s39 = sphi 0, %s36
      %s40 = sphi 0, %s39
      %s56 = sphi 0, %s40
      %s62 = sphi 0, %s64
      %s65 = sphi 0, %s62
      %s66 = sphi 0, %s65
      %s82 = sphi 0, %s66
      %s88 = sphi 0, %s90
      %s91 = sphi 0, %s88
      %s92 = sphi 0, %s91
      %s108 = sphi 0, %s92
      %s114 = sphi 0, %s116
      %s117 = sphi 0, %s114
      %s118 = sphi 0, %s117
      %s134 = sphi 0, %s118
      %s142 = sphi 0, %s144
      %s145 = sphi 0, %s142
      %s146 = sphi 0, %s145
      %s162 = sphi 0, %s146
    $region4: #{tpu_custom_call.1} parent=1 // loop_header_branch
      %17 = sbr.rel (%p15) target = $region8
    $region5: #{tpu_custom_call.1} parent=1 // loop_body
      %s19 = ssub.s32 %s14, 1
      %s20 = ssub.s32 %s14, 2
      %s27 = sadd.s32 1, %s22
      %p28 = scmp.ge.s32.totalorder %s27, 1
      %s29 = scalar_select %p28, 0, %s27
      %s30 = sadd.s32 1, %s21
      %s31 = scalar_select %p28, %s30, %s21
      %p32 = scmp.ge.s32.totalorder %s31, 2
      %s33 = scalar_select %p32, 0, %s31
      %s34 = ssub.s32 %s21, %s33
      %p35 = scmp.eq.s32.totalorder %s34, 0
      %s37 = sadd.s32 %s36, 1
      %s38 = scalar_select %p35, %s36, %s37
      %p41 = pneg %p35
      %p42 = scmp.eq.s32.totalorder %s14, 1
      %p43 = por %p41, %p42
      %p44 = scmp.ne.s32.totalorder %s36, %s39
      %p45 = scmp.eq.s32.totalorder %s14, 0
      %p46 = por %p44, %p45
      %p47 = scmp.ne.s32.totalorder %s36, %s39
      %p48 = scmp.eq.s32.totalorder %s19, 1
      %p49 = por %p47, %p48
      %p50 = scmp.ne.s32.totalorder %s39, %s40
      %p51 = scmp.eq.s32.totalorder %s19, 0
      %p52 = por %p50, %p51
      %p53 = scmp.ne.s32.totalorder %s39, %s40
      %p54 = scmp.eq.s32.totalorder %s20, 1
      %p55 = por %p53, %p54
      %p57 = scmp.ne.s32.totalorder %s40, %s56
      %p58 = scmp.eq.s32.totalorder %s20, 0
      %p59 = por %p57, %p58
      %s60 = ssub.s32 %s21, %s33
      %p61 = scmp.eq.s32.totalorder %s60, 0
      %s63 = sadd.s32 %s62, 1
      %s64 = scalar_select %p61, %s62, %s63
      %p67 = pneg %p61
      %p68 = scmp.eq.s32.totalorder %s14, 1
      %p69 = por %p67, %p68
      %p70 = scmp.ne.s32.totalorder %s62, %s65
      %p71 = scmp.eq.s32.totalorder %s14, 0
      %p72 = por %p70, %p71
      %p73 = scmp.ne.s32.totalorder %s62, %s65
      %p74 = scmp.eq.s32.totalorder %s19, 1
      %p75 = por %p73, %p74
      %p76 = scmp.ne.s32.totalorder %s65, %s66
      %p77 = scmp.eq.s32.totalorder %s19, 0
      %p78 = por %p76, %p77
      %p79 = scmp.ne.s32.totalorder %s65, %s66
      %p80 = scmp.eq.s32.totalorder %s20, 1
      %p81 = por %p79, %p80
      %p83 = scmp.ne.s32.totalorder %s66, %s82
      %p84 = scmp.eq.s32.totalorder %s20, 0
      %p85 = por %p83, %p84
      %s86 = ssub.s32 %s22, %s29
      %p87 = scmp.eq.s32.totalorder %s86, 0
      %s89 = sadd.s32 %s88, 1
      %s90 = scalar_select %p87, %s88, %s89
      %p93 = pneg %p87
      %p94 = scmp.eq.s32.totalorder %s14, 1
      %p95 = por %p93, %p94
      %p96 = scmp.ne.s32.totalorder %s88, %s91
      %p97 = scmp.eq.s32.totalorder %s14, 0
      %p98 = por %p96, %p97
      %p99 = scmp.ne.s32.totalorder %s88, %s91
      %p100 = scmp.eq.s32.totalorder %s19, 1
      %p101 = por %p99, %p100
      %p102 = scmp.ne.s32.totalorder %s91, %s92
      %p103 = scmp.eq.s32.totalorder %s19, 0
      %p104 = por %p102, %p103
      %p105 = scmp.ne.s32.totalorder %s91, %s92
      %p106 = scmp.eq.s32.totalorder %s20, 1
      %p107 = por %p105, %p106
      %p109 = scmp.ne.s32.totalorder %s92, %s108
      %p110 = scmp.eq.s32.totalorder %s20, 0
      %p111 = por %p109, %p110
      %s112 = ssub.s32 %s22, %s29
      %p113 = scmp.eq.s32.totalorder %s112, 0
      %s115 = sadd.s32 %s114, 1
      %s116 = scalar_select %p113, %s114, %s115
      %p119 = pneg %p113
      %p120 = scmp.eq.s32.totalorder %s14, 1
      %p121 = por %p119, %p120
      %p122 = scmp.ne.s32.totalorder %s114, %s117
      %p123 = scmp.eq.s32.totalorder %s14, 0
      %p124 = por %p122, %p123
      %p125 = scmp.ne.s32.totalorder %s114, %s117
      %p126 = scmp.eq.s32.totalorder %s19, 1
      %p127 = por %p125, %p126
      %p128 = scmp.ne.s32.totalorder %s117, %s118
      %p129 = scmp.eq.s32.totalorder %s19, 0
      %p130 = por %p128, %p129
      %p131 = scmp.ne.s32.totalorder %s117, %s118
      %p132 = scmp.eq.s32.totalorder %s20, 1
      %p133 = por %p131, %p132
      %p135 = scmp.ne.s32.totalorder %s118, %s134
      %p136 = scmp.eq.s32.totalorder %s20, 0
      %p137 = por %p135, %p136
      %s138 = ssub.s32 %s21, %s33
      %s139 = ssub.s32 %s22, %s29
      %s140 = sor.u32 %s138, %s139
      %p141 = scmp.eq.s32.totalorder %s140, 0
      %s143 = sadd.s32 %s142, 1
      %s144 = scalar_select %p141, %s142, %s143
      %p147 = pneg %p141
      %p148 = scmp.eq.s32.totalorder %s14, 1
      %p149 = por %p147, %p148
      %p150 = scmp.ne.s32.totalorder %s142, %s145
      %p151 = scmp.eq.s32.totalorder %s14, 0
      %p152 = por %p150, %p151
      %p153 = scmp.ne.s32.totalorder %s142, %s145
      %p154 = scmp.eq.s32.totalorder %s19, 1
      %p155 = por %p153, %p154
      %p156 = scmp.ne.s32.totalorder %s145, %s146
      %p157 = scmp.eq.s32.totalorder %s19, 0
      %p158 = por %p156, %p157
      %p159 = scmp.ne.s32.totalorder %s145, %s146
      %p160 = scmp.eq.s32.totalorder %s20, 1
      %p161 = por %p159, %p160
      %p163 = scmp.ne.s32.totalorder %s146, %s162
      %p164 = scmp.eq.s32.totalorder %s20, 0
      %p165 = por %p163, %p164
      %p166 = scmp.le.s32.totalorder 1, %s14
      %p167 = scmp.lt.s32.totalorder %s14, 3
      %p168 = pnand %p166, %p167
      %p169 = pneg %p168
      // Predicated region
      $region9: #{tpu_custom_call.1} parent=5 // pred_check
        _
      $region10: #{tpu_custom_call.1} parent=5 // pred_check_branch
        %171 = sbr.rel (%p168) target = $region12
      $region11: #{tpu_custom_call.1} parent=5 // pred_region
        %s172 = ssub.s32 %s14, 1
        // Predicated region
        $region13: #{tpu_custom_call.1} parent=11 // pred_check
          %p173 = pneg %p104
        $region14: #{tpu_custom_call.1} parent=11 // pred_check_branch
          %175 = sbr.rel (%p173) target = $region16
        $region15: #{tpu_custom_call.1} parent=11 // pred_region
          %177 = vsyncadd [#allocation3], 0
          %s178 = smul.addr %s24, 8
          %s179 = scalar_lea.hbm %s2, %s178
          %s180 = sshll.u32 %s179, 4
          %s181 = int_to_ptr.hbm [resolvable:$true] %s180
          %s182 = sshll.u32 [#allocation2], 4
          %s183 = int_to_ptr.vmem [resolvable:$true] %s182
          %188 = dma.hbm_to_vmem [thread:$0]  %s181, 512, %s183, [#allocation3], 128, 128, 8
        $region16: #{tpu_custom_call.1} parent=11 // pred_fallthru
          _
        // Predicated region
        $region17: #{tpu_custom_call.1} parent=11 // pred_check
          %p189 = pneg %p130
        $region18: #{tpu_custom_call.1} parent=11 // pred_check_branch
          %191 = sbr.rel (%p189) target = $region20
        $region19: #{tpu_custom_call.1} parent=11 // pred_region
          %p192 = scmp.lt.s32.totalorder %s24, 0
          %s193 = scalar_select %p192, %s24, 0
          %s194 = scalar_lea.vmem %s3, %s193
        $region20: #{tpu_custom_call.1} parent=11 // pred_fallthru
          _
      $region12: #{tpu_custom_call.1} parent=5 // pred_fallthru
        _
      %p195 = scmp.lt.s32.totalorder %s14, 2
      // Predicated region
      $region21: #{tpu_custom_call.1} parent=5 // pred_check
        %p196 = pneg %p195
      $region22: #{tpu_custom_call.1} parent=5 // pred_check_branch
        %198 = sbr.rel (%p196) target = $region24
      $region23: #{tpu_custom_call.1} parent=5 // pred_region
        // Predicated region
        $region25: #{tpu_custom_call.1} parent=23 // pred_check
          %p199 = pneg %p46
        $region26: #{tpu_custom_call.1} parent=23 // pred_check_branch
          %201 = sbr.rel (%p199) target = $region28
        $region27: #{tpu_custom_call.1} parent=23 // pred_region
          %p202 = scmp.lt.s32.totalorder %s21, 1
          %s203 = scalar_select %p202, %s21, 1
          %s204 = smul.addr %s203, 8
          %s205 = scalar_lea.vmem %s0, %s204
        $region28: #{tpu_custom_call.1} parent=23 // pred_fallthru
          _
        // Predicated region
        $region29: #{tpu_custom_call.1} parent=23 // pred_check
          %p206 = pneg %p72
        $region30: #{tpu_custom_call.1} parent=23 // pred_check_branch
          %208 = sbr.rel (%p206) target = $region32
        $region31: #{tpu_custom_call.1} parent=23 // pred_region
          %p209 = scmp.lt.s32.totalorder %s21, 1
          %s210 = scalar_select %p209, %s21, 1
          %s211 = smul.addr %s210, 8
          %s212 = scalar_lea.vmem %s1, %s211
        $region32: #{tpu_custom_call.1} parent=23 // pred_fallthru
          _
      $region24: #{tpu_custom_call.1} parent=5 // pred_fallthru
        _
      %p213 = scmp.le.s32.totalorder 1, %s14
      %p214 = scmp.lt.s32.totalorder %s14, 3
      %p215 = pnand %p213, %p214
      %p216 = pneg %p215
      // Predicated region
      $region33: #{tpu_custom_call.1} parent=5 // pred_check
        _
      $region34: #{tpu_custom_call.1} parent=5 // pred_check_branch
        %218 = sbr.rel (%p215) target = $region36
      $region35: #{tpu_custom_call.1} parent=5 // pred_region
        %s219 = ssub.s32 %s14, 1
        // Predicated region
        $region37: #{tpu_custom_call.1} parent=35 // pred_check
          %p220 = pneg %p104
        $region38: #{tpu_custom_call.1} parent=35 // pred_check_branch
          %222 = sbr.rel (%p220) target = $region40
        $region39: #{tpu_custom_call.1} parent=35 // pred_region
          %224 = dma.done [#allocation3], 512
        $region40: #{tpu_custom_call.1} parent=35 // pred_fallthru
          _
        %p225 = scmp.lt.s32.totalorder %s23, 1
        %s226 = scalar_select %p225, %s23, 1
        %s227 = smul.addr %s226, 8
        %s228 = scalar_lea.vmem %s0, %s227
        %p229 = pneg %p52
        %p230 = pneg %p49
        %p231 = scmp.lt.s32.totalorder %s23, 1
        %s232 = scalar_select %p231, %s23, 1
        %s233 = smul.addr %s232, 8
        %s234 = scalar_lea.vmem %s1, %s233
        %p235 = pneg %p78
        %p236 = pneg %p75
        %p237 = pneg %p104
        %p238 = pneg %p101
        %p239 = scmp.lt.s32.totalorder %s24, 0
        %s240 = scalar_select %p239, %s24, 0
        %s241 = scalar_lea.vmem %s3, %s240
        %p242 = pneg %p130
        %p243 = pneg %p127
        %p244 = pneg %p158
        %p245 = pneg %p155
        %s246 = sand.u32 %s145, 1
        %s247 = scalar_lea.sflag [#allocation4], %s246
        %s248 = sand.u32 %s145, 1
        %s249 = scalar_lea.vmem [#allocation5], %s248
        %p250 = scmp.lt.s32.totalorder %s23, 1
        %s251 = scalar_select %p250, %s23, 1
        %s252 = smul.addr %s251, 8
        %s253 = scalar_lea.vmem %s0, %s252
        %p254 = scmp.lt.s32.totalorder %s23, 1
        %s255 = scalar_select %p254, %s23, 1
        %s256 = smul.addr %s255, 8
        %s257 = scalar_lea.vmem %s1, %s256
        %p258 = scmp.lt.s32.totalorder %s24, 0
        %s259 = scalar_select %p258, %s24, 0
        %s260 = scalar_lea.vmem %s3, %s259
        %v261 = vld [vmem:[%s257] sm:$0xff]
        %v262 = vmul.f32 %v261, %v261
        %vm263 = vcmask 261120
        %v264 = vsel %vm263, %v262, 0.0
        %265 = vadd.xlane.f32.xlu0 %v264
        %v266 = vpop.xlane.xlu0 %265
        %v267 = vld [vmem:[#allocation2] sm:$0xff]
        %v268 = vld [vmem:[#allocation2 + $0x8] sm:$0xff]
        %v269 = vld [vmem:[#allocation2 + $0x10] sm:$0xff]
        %v270 = vld [vmem:[#allocation2 + $0x18] sm:$0xff]
        %v272 = vsel %vm263, %v261, 0
        %274 = vmatpush.msra.mxu0 0.0
        %275 = vmatpush.msra.mxu0 0.0
        %276 = vmatpush.msra.mxu0 0.0
        %277 = vmatpush.msra.mxu0 0.0
        %278 = vmatpush.msra.mxu0 0.0
        %279 = vmatpush.msra.mxu0 0.0
        %280 = vmatpush.msra.mxu0 0.0
        %281 = vmatpush.msra.mxu0 0.0
        %282 = vmatpush.msra.mxu0 0.0
        %283 = vmatpush.msra.mxu0 0.0
        %284 = vmatpush.msra.mxu0 0.0
        %285 = vmatpush.msra.mxu0 0.0
        %286 = vmatpush.msra.mxu0 %v270
        %287 = vmatpush.msra.mxu0 %v269
        %288 = vmatpush.msra.mxu0 %v268
        %289 = vmatpush.msra.mxu0 %v267
        %290 = vmatmul.f32.gmra.mxu0 %v272
        %v291 = vpop.f32.mrf.mxu0
        %v292 = vadd.f32 0.0, %v291
        %293 = vdwg.mxu0
        %v294 = vld [vmem:[%s260] sm:$0x1]
        %v296 = vperm.slane %v294, 0
        %v298 = vadd.f32 %v266, %v296
        %v299 = vmul.f32 %v292, 2.0
        %v300 = vsub.f32 %v298, %v299
        %v301 = vmax.f32 %v300, 0.0
        %v302 = vlaneseq
        %v303 = vshrl.u32 %v302, 7
        %s304 = smul.u32 %s23, 8
        %v305 = vstv %s304
        %v306 = vadd.s32 %v305, %v303
        %vm307 = vcmp.lt.s32.totalorder %v306, 13
        %v308 = vsel %vm307, 1, 0
        %vm309 = vcmp.eq.s32.totalorder %v308, 1
        %v310 = vsel %vm309, %v301, 0.0
        %v311 = vlaneseq
        %v312 = vand.u32 %v311, 127
        %v313 = vld [vmem:[%s253] sm:$0xff]
        %s314 = smul.u32 %s24, 128
        %v315 = vstv %s314
        %v316 = vsub.s32 %v313, %v315
        %317 = vset.pattern.permute.xlu0 0
        %318 = vperm.xlu0 %317, %v316
        %v319 = vpop.permute.xlu0 %318
        %vm320 = vcmp.eq.s32.totalorder %v312, %v319
        %321 = vadd.xlane.f32.xlu0 %v310
        %v322 = vpop.xlane.xlu0 %321
        %v323 = vrot.slane %v322, 4
        %v324 = vadd.f32 %v322, %v323
        %v325 = vrot.slane %v324, 2
        %v326 = vadd.f32 %v324, %v325
        %v327 = vrot.slane %v326, 1
        %v328 = vadd.f32 %v326, %v327
        %v329 = vsel %vm320, %v310, 0.0
        %330 = vadd.xlane.f32.xlu0 %v329
        %v331 = vpop.xlane.xlu0 %330
        %v332 = vrot.slane %v331, 4
        %v333 = vadd.f32 %v331, %v332
        %v334 = vrot.slane %v333, 2
        %v335 = vadd.f32 %v333, %v334
        %v336 = vrot.slane %v335, 1
        %v337 = vadd.f32 %v335, %v336
        %vm338 = vcmp.eq.s32.totalorder %v312, 0
        %v339 = vsel %vm338, %v337, 0.0
        %vm340 = vcmp.eq.s32.totalorder %v312, 1
        %v341 = vsel %vm340, %v328, 0.0
        %v342 = vadd.f32 %v339, %v341
        %343 = vst [vmem:[%s249] sm:$0x1] %v342
        %s344 = sand.u32 %s145, 1
        %s345 = scalar_lea.sflag [#allocation4], %s344
        %s346 = sand.u32 %s145, 1
        %s347 = scalar_lea.vmem [#allocation5], %s346
        // Predicated region
        $region41: #{tpu_custom_call.1} parent=35 // pred_check
          %p348 = pneg %p155
        $region42: #{tpu_custom_call.1} parent=35 // pred_check_branch
          %350 = sbr.rel (%p348) target = $region44
        $region43: #{tpu_custom_call.1} parent=35 // pred_region
          %352 = vsyncadd %s345, 0
          %s353 = sadd.s32 %s24, %s23
          %s354 = scalar_lea.hbm %s4, %s353
          %s356 = sshll.u32 %s347, 4
          %s357 = int_to_ptr.vmem [resolvable:$true] %s356
          %s358 = sshll.u32 %s354, 4
          %s359 = int_to_ptr.hbm [resolvable:$true] %s358
          %361 = dma.vmem_to_hbm [thread:$0]  %s357, 16, %s359, %s345
        $region44: #{tpu_custom_call.1} parent=35 // pred_fallthru
          _
      $region36: #{tpu_custom_call.1} parent=5 // pred_fallthru
        _
      %p362 = scmp.le.s32.totalorder 2, %s14
      // Predicated region
      $region45: #{tpu_custom_call.1} parent=5 // pred_check
        %p363 = pneg %p362
      $region46: #{tpu_custom_call.1} parent=5 // pred_check_branch
        %365 = sbr.rel (%p363) target = $region48
      $region47: #{tpu_custom_call.1} parent=5 // pred_region
        %s366 = ssub.s32 %s14, 2
        // Predicated region
        $region49: #{tpu_custom_call.1} parent=47 // pred_check
          %p367 = pneg %p161
        $region50: #{tpu_custom_call.1} parent=47 // pred_check_branch
          %369 = sbr.rel (%p367) target = $region52
        $region51: #{tpu_custom_call.1} parent=47 // pred_region
          %s370 = sand.u32 %s146, 1
          %s371 = scalar_lea.sflag [#allocation4], %s370
          %s372 = sand.u32 %s146, 1
          %s373 = scalar_lea.vmem [#allocation5], %s372
          %375 = dma.done %s371, 16
        $region52: #{tpu_custom_call.1} parent=47 // pred_fallthru
          _
      $region48: #{tpu_custom_call.1} parent=5 // pred_fallthru
        _
    $region6: #{tpu_custom_call.1} parent=1 // loop_footer
      %s18 = sadd.s32 1, %s14
    $region7: #{tpu_custom_call.1} parent=1 // loop_footer_branch
      %13 = sbr.rel target = $region3
    $region8: #{tpu_custom_call.1} parent=1 // loop_exit
      _
    %376 = vsyncpa [#allocation3], 1
    %s377 = scalar_lea.sflag [#allocation3], 1
    %378 = vsyncpa %s377, 1
    %379 = vsyncpa [#allocation4], 1
    %s380 = scalar_lea.sflag [#allocation4], 1
    %381 = vsyncpa %s380, 1

</llo_original>
